<compile_context>
chip_gen: v7x
topology: tpu7x:2x2x1
jax: 0.10.0
libtpu: 0.0.40
codegen_flags: <defaults>
</compile_context>

<pallas_src>
import jax
import jax.numpy as jnp
from jax.experimental import pallas as pl
from jax.experimental.pallas import tpu as pltpu  # noqa: F401  (TPU backend)

BN_EPS = 1e-5


# ----------------------------------------------------------------------------- kernel
def gnn_nodes_kernel(a_ref, x_ref,
                     w1_ref, g1_ref, be1_ref,
                     w2_ref, g2_ref, be2_ref,
                     wo0_ref, wo1_ref, wo2_ref, bo_ref,
                     out_ref):
    a = a_ref[...]            # [N, N] normalized dense adjacency (bf16)
    x = x_ref[...]            # [N, F] node features (bf16)

    def gcn_conv(h_bf16, w_ref):
        # Pick the cheaper contraction order (shapes are static at trace time).
        in_dim, out_dim = h_bf16.shape[1], w_ref.shape[1]
        if in_dim < out_dim:
            ah = jnp.dot(a, h_bf16, preferred_element_type=jnp.float32)
            return jnp.dot(ah.astype(jnp.bfloat16), w_ref[...],
                           preferred_element_type=jnp.float32)
        hw = jnp.dot(h_bf16, w_ref[...], preferred_element_type=jnp.float32)
        return jnp.dot(a, hw.astype(jnp.bfloat16),
                       preferred_element_type=jnp.float32)

    def batch_norm(h, g_ref, be_ref):
        # One-pass biased batch stats over nodes + fused affine (scale/shift), all f32.
        n_inv = 1.0 / h.shape[0]
        mean = jnp.sum(h, axis=0, keepdims=True) * n_inv
        m2 = jnp.sum(h * h, axis=0, keepdims=True) * n_inv
        var = jnp.maximum(m2 - mean * mean, 0.0)
        scale = g_ref[...] * jax.lax.rsqrt(var + BN_EPS)    # EUP rsqrt (free slot)
        shift = be_ref[...] - mean * scale
        return h * scale + shift
        # Dropout(p=0.0) == identity

    h1 = batch_norm(gcn_conv(x, w1_ref), g1_ref, be1_ref)          # [N, H] f32
    h1_b = h1.astype(jnp.bfloat16)
    h2 = batch_norm(gcn_conv(h1_b, w2_ref), g2_ref, be2_ref)       # [N, H] f32
    h2_b = h2.astype(jnp.bfloat16)

    # Final Linear on concat([x, h1, h2], dim=1), expressed as a sum of three matmuls
    # against the row-split (and lane-padded) output weight; avoids an in-kernel concat.
    out = (jnp.dot(x, wo0_ref[...], preferred_element_type=jnp.float32)
           + jnp.dot(h1_b, wo1_ref[...], preferred_element_type=jnp.float32)
           + jnp.dot(h2_b, wo2_ref[...], preferred_element_type=jnp.float32)
           + bo_ref[...])
    out_ref[...] = out          # [N, 128] lane-dense unmasked store


# ----------------------------------------------------------------------------- wrapper
def _full_spec(arr):
    # whole-array block, no grid
    return pl.BlockSpec(arr.shape, lambda: (0,) * arr.ndim)


def gnn_nodes_forward(a_hat, x, params):
    (w1, b1, g1, be1, w2, b2, g2, be2, wo, bo) = params
    del b1, b2   # GCNConv biases cancel exactly under BatchNorm mean subtraction
    N, F = x.shape
    H = w1.shape[1]
    C = wo.shape[1]
    C_PAD = 128  # lane-dense output store; real classes live in the first C lanes

    # Pad the output-layer weight/bias columns with zeros and split rows along the
    # concat axis [F | H | H].  (XLA-side prep, outside the kernel; trivially cheap.)
    wo_p = jnp.zeros((F + 2 * H, C_PAD), jnp.float32).at[:, :C].set(wo)
    bo_p = jnp.zeros((1, C_PAD), jnp.float32).at[0, :C].set(bo)
    wo0, wo1, wo2 = wo_p[:F], wo_p[F:F + H], wo_p[F + H:]

    bf16 = jnp.bfloat16
    operands = (a_hat.astype(bf16), x.astype(bf16),
                w1.astype(bf16), g1.reshape(1, -1), be1.reshape(1, -1),
                w2.astype(bf16), g2.reshape(1, -1), be2.reshape(1, -1),
                wo0.astype(bf16), wo1.astype(bf16), wo2.astype(bf16), bo_p)

    flops = (2 * (N * N * F + N * F * H)          # layer 1  (A@X)@W1
             + 2 * (N * H * H + N * N * H)        # layer 2  A@(H@W2)
             + 2 * N * (F + 2 * H) * C_PAD)       # output linear (padded lanes)
    bytes_accessed = sum(int(o.size) * o.dtype.itemsize for o in operands) + N * C_PAD * 4
    cost = pl.CostEstimate(flops=flops, transcendentals=2 * H,
                           bytes_accessed=bytes_accessed)

    out = pl.pallas_call(
        gnn_nodes_kernel,
        out_shape=jax.ShapeDtypeStruct((N, C_PAD), jnp.float32),
        in_specs=[_full_spec(o) for o in operands],
        out_specs=pl.BlockSpec((N, C_PAD), lambda: (0, 0)),
        cost_estimate=cost,
    )(*operands)
    return out[:, :C]


# ----------------------------------------------------------------------------- glue
def build_normalized_adjacency(edge_index, num_nodes):
    """Dense GCN normalization: D^{-1/2} (A + I) D^{-1/2} with A[dst, src] = 1."""
    src, dst = edge_index[0], edge_index[1]
    a = jnp.zeros((num_nodes, num_nodes), jnp.float32)
    a = a.at[dst, src].set(1.0)
    a = a + jnp.eye(num_nodes, dtype=jnp.float32)          # self loops
    a = jnp.minimum(a, 1.0)                                 # dedupe
    deg = jnp.sum(a, axis=1)
    d_inv_sqrt = jnp.where(deg > 0, 1.0 / jnp.sqrt(deg), 0.0)
    return d_inv_sqrt[:, None] * a * d_inv_sqrt[None, :]


def reference_forward(a_hat, x, params):
    """Full-f32 reference, including the GCNConv biases (kernel drops them; they cancel)."""
    (w1, b1, g1, be1, w2, b2, g2, be2, wo, bo) = params

    def gcn_bn(h_in, w, b, g, be):
        h = a_hat @ (h_in @ w) + b
        mean = jnp.mean(h, axis=0, keepdims=True)
        var = jnp.mean((h - mean) ** 2, axis=0, keepdims=True)
        return (h - mean) / jnp.sqrt(var + BN_EPS) * g + be

    h1 = gcn_bn(x, w1, b1, g1, be1)
    h2 = gcn_bn(h1, w2, b2, g2, be2)
    return jnp.concatenate([x, h1, h2], axis=1) @ wo + bo


# ----------------------------------------------------------------------------- main
if __name__ == "__main__":
    N, F, H, C = 64, 16, 32, 8        # nodes, num_features, hidden_channels, num_classes
    E = 128                           # directed edges before symmetrization

    key = jax.random.PRNGKey(0)
    k_x, k_e, k_w1, k_w2, k_wo, k_b, k_b1, k_b2 = jax.random.split(key, 8)

    x = jax.random.normal(k_x, (N, F), jnp.float32)
    e_src = jax.random.randint(k_e, (E,), 0, N)
    e_dst = jax.random.randint(jax.random.fold_in(k_e, 1), (E,), 0, N)
    # undirected graph: add both directions
    edge_index = jnp.stack([jnp.concatenate([e_src, e_dst]),
                            jnp.concatenate([e_dst, e_src])], axis=0)

    # deterministic parameter init (glorot-ish scale); BN: gamma=1, beta=0
    # conv biases are NONZERO here to exercise the exact BN-cancellation in the kernel.
    w1 = jax.random.normal(k_w1, (F, H), jnp.float32) * (1.0 / jnp.sqrt(F))
    b1 = jax.random.normal(k_b1, (H,), jnp.float32) * 0.1
    g1 = jnp.ones((H,), jnp.float32)
    be1 = jnp.zeros((H,), jnp.float32)
    w2 = jax.random.normal(k_w2, (H, H), jnp.float32) * (1.0 / jnp.sqrt(H))
    b2 = jax.random.normal(k_b2, (H,), jnp.float32) * 0.1
    g2 = jnp.ones((H,), jnp.float32)
    be2 = jnp.zeros((H,), jnp.float32)
    wo = jax.random.normal(k_wo, (F + 2 * H, C), jnp.float32) * (1.0 / jnp.sqrt(F + 2 * H))
    bo = jax.random.normal(k_b, (C,), jnp.float32) * 0.01
    params = (w1, b1, g1, be1, w2, b2, g2, be2, wo, bo)

    a_hat = build_normalized_adjacency(edge_index, N)

    out = gnn_nodes_forward(a_hat, x, params)
    out = jax.block_until_ready(out)

    ref = reference_forward(a_hat, x, params)
    assert out.shape == (N, C)
    # bf16 MXU operands (f32 accumulation) -> looser tolerance than a pure-f32 compare
    assert jnp.allclose(out, ref, atol=3e-2, rtol=3e-2), "mismatch vs JAX reference"

    print("KERNEL_OK")
</pallas_src>

<mosaic_0001>
module attributes {stable_mosaic.version = 11 : i64} {
  func.func @gnn_nodes_kernel(%arg0: memref<64x64xbf16, #tpu.memory_space<vmem>>, %arg1: memref<64x16xbf16, #tpu.memory_space<vmem>>, %arg2: memref<16x32xbf16, #tpu.memory_space<vmem>>, %arg3: memref<1x32xf32, #tpu.memory_space<vmem>>, %arg4: memref<1x32xf32, #tpu.memory_space<vmem>>, %arg5: memref<32x32xbf16, #tpu.memory_space<vmem>>, %arg6: memref<1x32xf32, #tpu.memory_space<vmem>>, %arg7: memref<1x32xf32, #tpu.memory_space<vmem>>, %arg8: memref<16x128xbf16, #tpu.memory_space<vmem>>, %arg9: memref<32x128xbf16, #tpu.memory_space<vmem>>, %arg10: memref<32x128xbf16, #tpu.memory_space<vmem>>, %arg11: memref<1x128xf32, #tpu.memory_space<vmem>>, %arg12: memref<64x128xf32, #tpu.memory_space<vmem>>) attributes {dimension_semantics = [], scalar_prefetch = 0 : i64, scratch_operands = 0 : i64, tpu.core_type = #tpu.core_type<tc>} {
    %c0 = arith.constant 0 : index
    %c0_0 = arith.constant 0 : index
    %0 = vector.load %arg0[%c0, %c0_0] : memref<64x64xbf16, #tpu.memory_space<vmem>>, vector<64x64xbf16>
    %c0_1 = arith.constant 0 : index
    %c0_2 = arith.constant 0 : index
    %1 = vector.load %arg1[%c0_1, %c0_2] : memref<64x16xbf16, #tpu.memory_space<vmem>>, vector<64x16xbf16>
    %cst = arith.constant dense<0.000000e+00> : vector<64x16xf32>
    %2 = tpu.matmul %0, %1, %cst {dimension_numbers = #tpu.dot_dimension_numbers<[1], [0], [0], [1], [0, 0, 1, 1], [], []>} : vector<64x64xbf16>, vector<64x16xbf16>, vector<64x16xf32> -> vector<64x16xf32>
    %3 = arith.truncf %2 : vector<64x16xf32> to vector<64x16xbf16>
    %c0_3 = arith.constant 0 : index
    %c0_4 = arith.constant 0 : index
    %4 = vector.load %arg2[%c0_3, %c0_4] : memref<16x32xbf16, #tpu.memory_space<vmem>>, vector<16x32xbf16>
    %cst_5 = arith.constant dense<0.000000e+00> : vector<64x32xf32>
    %5 = tpu.matmul %3, %4, %cst_5 {dimension_numbers = #tpu.dot_dimension_numbers<[1], [0], [0], [1], [0, 0, 1, 1], [], []>} : vector<64x16xbf16>, vector<16x32xbf16>, vector<64x32xf32> -> vector<64x32xf32>
    %cst_6 = arith.constant dense<0.000000e+00> : vector<32xf32>
    %6 = vector.multi_reduction <add>, %5, %cst_6 [0] : vector<64x32xf32> to vector<32xf32>
    %7 = vector.shape_cast %6 : vector<32xf32> to vector<1x32xf32>
    %cst_7 = arith.constant 1.562500e-02 : f32
    %8 = vector.broadcast %cst_7 : f32 to vector<1x32xf32>
    %9 = arith.mulf %7, %8 : vector<1x32xf32>
    %10 = arith.mulf %5, %5 : vector<64x32xf32>
    %cst_8 = arith.constant dense<0.000000e+00> : vector<32xf32>
    %11 = vector.multi_reduction <add>, %10, %cst_8 [0] : vector<64x32xf32> to vector<32xf32>
    %12 = vector.shape_cast %11 : vector<32xf32> to vector<1x32xf32>
    %cst_9 = arith.constant 1.562500e-02 : f32
    %13 = vector.broadcast %cst_9 : f32 to vector<1x32xf32>
    %14 = arith.mulf %12, %13 : vector<1x32xf32>
    %15 = arith.mulf %9, %9 : vector<1x32xf32>
    %16 = arith.subf %14, %15 : vector<1x32xf32>
    %cst_10 = arith.constant 0.000000e+00 : f32
    %17 = vector.broadcast %cst_10 : f32 to vector<1x32xf32>
    %18 = arith.maximumf %16, %17 : vector<1x32xf32>
    %c0_11 = arith.constant 0 : index
    %c0_12 = arith.constant 0 : index
    %19 = vector.load %arg3[%c0_11, %c0_12] : memref<1x32xf32, #tpu.memory_space<vmem>>, vector<1x32xf32>
    %cst_13 = arith.constant 9.99999974E-6 : f32
    %20 = vector.broadcast %cst_13 : f32 to vector<1x32xf32>
    %21 = arith.addf %18, %20 : vector<1x32xf32>
    %22 = math.rsqrt %21 : vector<1x32xf32>
    %23 = arith.mulf %19, %22 : vector<1x32xf32>
    %c0_14 = arith.constant 0 : index
    %c0_15 = arith.constant 0 : index
    %24 = vector.load %arg4[%c0_14, %c0_15] : memref<1x32xf32, #tpu.memory_space<vmem>>, vector<1x32xf32>
    %25 = arith.mulf %9, %23 : vector<1x32xf32>
    %26 = arith.subf %24, %25 : vector<1x32xf32>
    %27 = vector.broadcast %23 : vector<1x32xf32> to vector<64x32xf32>
    %28 = arith.mulf %5, %27 : vector<64x32xf32>
    %29 = vector.broadcast %26 : vector<1x32xf32> to vector<64x32xf32>
    %30 = arith.addf %28, %29 : vector<64x32xf32>
    %31 = arith.truncf %30 : vector<64x32xf32> to vector<64x32xbf16>
    %c0_16 = arith.constant 0 : index
    %c0_17 = arith.constant 0 : index
    %32 = vector.load %arg5[%c0_16, %c0_17] : memref<32x32xbf16, #tpu.memory_space<vmem>>, vector<32x32xbf16>
    %cst_18 = arith.constant dense<0.000000e+00> : vector<64x32xf32>
    %33 = tpu.matmul %31, %32, %cst_18 {dimension_numbers = #tpu.dot_dimension_numbers<[1], [0], [0], [1], [0, 0, 1, 1], [], []>} : vector<64x32xbf16>, vector<32x32xbf16>, vector<64x32xf32> -> vector<64x32xf32>
    %34 = arith.truncf %33 : vector<64x32xf32> to vector<64x32xbf16>
    %cst_19 = arith.constant dense<0.000000e+00> : vector<64x32xf32>
    %35 = tpu.matmul %0, %34, %cst_19 {dimension_numbers = #tpu.dot_dimension_numbers<[1], [0], [0], [1], [0, 0, 1, 1], [], []>} : vector<64x64xbf16>, vector<64x32xbf16>, vector<64x32xf32> -> vector<64x32xf32>
    %cst_20 = arith.constant dense<0.000000e+00> : vector<32xf32>
    %36 = vector.multi_reduction <add>, %35, %cst_20 [0] : vector<64x32xf32> to vector<32xf32>
    %37 = vector.shape_cast %36 : vector<32xf32> to vector<1x32xf32>
    %cst_21 = arith.constant 1.562500e-02 : f32
    %38 = vector.broadcast %cst_21 : f32 to vector<1x32xf32>
    %39 = arith.mulf %37, %38 : vector<1x32xf32>
    %40 = arith.mulf %35, %35 : vector<64x32xf32>
    %cst_22 = arith.constant dense<0.000000e+00> : vector<32xf32>
    %41 = vector.multi_reduction <add>, %40, %cst_22 [0] : vector<64x32xf32> to vector<32xf32>
    %42 = vector.shape_cast %41 : vector<32xf32> to vector<1x32xf32>
    %cst_23 = arith.constant 1.562500e-02 : f32
    %43 = vector.broadcast %cst_23 : f32 to vector<1x32xf32>
    %44 = arith.mulf %42, %43 : vector<1x32xf32>
    %45 = arith.mulf %39, %39 : vector<1x32xf32>
    %46 = arith.subf %44, %45 : vector<1x32xf32>
    %cst_24 = arith.constant 0.000000e+00 : f32
    %47 = vector.broadcast %cst_24 : f32 to vector<1x32xf32>
    %48 = arith.maximumf %46, %47 : vector<1x32xf32>
    %c0_25 = arith.constant 0 : index
    %c0_26 = arith.constant 0 : index
    %49 = vector.load %arg6[%c0_25, %c0_26] : memref<1x32xf32, #tpu.memory_space<vmem>>, vector<1x32xf32>
    %cst_27 = arith.constant 9.99999974E-6 : f32
    %50 = vector.broadcast %cst_27 : f32 to vector<1x32xf32>
    %51 = arith.addf %48, %50 : vector<1x32xf32>
    %52 = math.rsqrt %51 : vector<1x32xf32>
    %53 = arith.mulf %49, %52 : vector<1x32xf32>
    %c0_28 = arith.constant 0 : index
    %c0_29 = arith.constant 0 : index
    %54 = vector.load %arg7[%c0_28, %c0_29] : memref<1x32xf32, #tpu.memory_space<vmem>>, vector<1x32xf32>
    %55 = arith.mulf %39, %53 : vector<1x32xf32>
    %56 = arith.subf %54, %55 : vector<1x32xf32>
    %57 = vector.broadcast %53 : vector<1x32xf32> to vector<64x32xf32>
    %58 = arith.mulf %35, %57 : vector<64x32xf32>
    %59 = vector.broadcast %56 : vector<1x32xf32> to vector<64x32xf32>
    %60 = arith.addf %58, %59 : vector<64x32xf32>
    %61 = arith.truncf %60 : vector<64x32xf32> to vector<64x32xbf16>
    %c0_30 = arith.constant 0 : index
    %c0_31 = arith.constant 0 : index
    %62 = vector.load %arg8[%c0_30, %c0_31] : memref<16x128xbf16, #tpu.memory_space<vmem>>, vector<16x128xbf16>
    %cst_32 = arith.constant dense<0.000000e+00> : vector<64x128xf32>
    %63 = tpu.matmul %1, %62, %cst_32 {dimension_numbers = #tpu.dot_dimension_numbers<[1], [0], [0], [1], [0, 0, 1, 1], [], []>} : vector<64x16xbf16>, vector<16x128xbf16>, vector<64x128xf32> -> vector<64x128xf32>
    %c0_33 = arith.constant 0 : index
    %c0_34 = arith.constant 0 : index
    %64 = vector.load %arg9[%c0_33, %c0_34] : memref<32x128xbf16, #tpu.memory_space<vmem>>, vector<32x128xbf16>
    %cst_35 = arith.constant dense<0.000000e+00> : vector<64x128xf32>
    %65 = tpu.matmul %31, %64, %cst_35 {dimension_numbers = #tpu.dot_dimension_numbers<[1], [0], [0], [1], [0, 0, 1, 1], [], []>} : vector<64x32xbf16>, vector<32x128xbf16>, vector<64x128xf32> -> vector<64x128xf32>
    %66 = arith.addf %63, %65 : vector<64x128xf32>
    %c0_36 = arith.constant 0 : index
    %c0_37 = arith.constant 0 : index
    %67 = vector.load %arg10[%c0_36, %c0_37] : memref<32x128xbf16, #tpu.memory_space<vmem>>, vector<32x128xbf16>
    %cst_38 = arith.constant dense<0.000000e+00> : vector<64x128xf32>
    %68 = tpu.matmul %61, %67, %cst_38 {dimension_numbers = #tpu.dot_dimension_numbers<[1], [0], [0], [1], [0, 0, 1, 1], [], []>} : vector<64x32xbf16>, vector<32x128xbf16>, vector<64x128xf32> -> vector<64x128xf32>
    %69 = arith.addf %66, %68 : vector<64x128xf32>
    %c0_39 = arith.constant 0 : index
    %c0_40 = arith.constant 0 : index
    %70 = vector.load %arg11[%c0_39, %c0_40] : memref<1x128xf32, #tpu.memory_space<vmem>>, vector<1x128xf32>
    %71 = vector.broadcast %70 : vector<1x128xf32> to vector<64x128xf32>
    %72 = arith.addf %69, %71 : vector<64x128xf32>
    %c0_41 = arith.constant 0 : index
    %c0_42 = arith.constant 0 : index
    %73 = vector.load %arg12[%c0_41, %c0_42] : memref<64x128xf32, #tpu.memory_space<vmem>>, vector<64x128xf32>
    tpu.vector_store %arg12[%c0_41, %c0_42], %72 {strides = array<i32>} : memref<64x128xf32, #tpu.memory_space<vmem>>, vector<64x128xf32>,
    return
  }
}

</mosaic_0001>

<llo_original>
// kernel: tpu_custom_call.1
$region0: #{tpu_custom_call.1}
  #allocation0 [shape = 'u32[]', space=smem, size = 0x4, offset = 0x4, fixed_abs, tag = 'smem constant byte address 0x4 - core index']
  #allocation1 [shape = 'u32[144,128]{1,0:T(1,128)}', space=vmem, size = 0x12000, scoped, tag = 'internal scratch']
  %s0 = inlined_call_operand.vmem [shape: bf16[64,64], index: 0, kind: input, shape index: {}]
  %s1 = inlined_call_operand.vmem [shape: bf16[64,16], index: 1, kind: input, shape index: {}]
  %s2 = inlined_call_operand.hbm [shape: bf16[16,32], index: 2, kind: input, shape index: {}]
  %s3 = inlined_call_operand.vmem [shape: f32[1,32], index: 3, kind: input, shape index: {}]
  %s4 = inlined_call_operand.vmem [shape: f32[1,32], index: 4, kind: input, shape index: {}]
  %s5 = inlined_call_operand.vmem [shape: bf16[32,32], index: 5, kind: input, shape index: {}]
  %s6 = inlined_call_operand.hbm [shape: f32[1,32], index: 6, kind: input, shape index: {}]
  %s7 = inlined_call_operand.hbm [shape: f32[1,32], index: 7, kind: input, shape index: {}]
  %s8 = inlined_call_operand.hbm [shape: bf16[16,128], index: 8, kind: input, shape index: {}]
  %s9 = inlined_call_operand.vmem [shape: bf16[32,128], index: 9, kind: input, shape index: {}]
  %s10 = inlined_call_operand.hbm [shape: bf16[32,128], index: 10, kind: input, shape index: {}]
  %s11 = inlined_call_operand.vmem [shape: f32[1,128], index: 11, kind: input, shape index: {}]
  %s12 = inlined_call_operand.hbm [shape: f32[64,128], index: 12, kind: output, shape index: {}]
  %s13 = sld [smem:[#allocation0]]
  $region78: #{tpu_custom_call.1} parent=0
    _
  %s15 = ssub.s32 1, %s13
  %s16 = scalar_select 0, %s15, %s13
  $region1: #{tpu_custom_call.1} parent=0
    #allocation2 [shape = 'u8[4096]{0}', space=vmem, size = 0x1000, scoped, tag = 'input window, operand 2, single buffered']
    #allocation3 [shape = 's32[1]{0}', space=sflag, size = 0x4, scoped, tag = 'scoped memory for tpu_custom_call.1']
    #allocation4 [shape = 's32[1]{0}', space=sflag, size = 0x4, scoped, tag = 'scoped memory for tpu_custom_call.1']
    #allocation5 [shape = 'u8[512]{0}', space=vmem, size = 0x400, scoped, tag = 'input window, operand 6, single buffered']
    #allocation6 [shape = 's32[1]{0}', space=sflag, size = 0x4, scoped, tag = 'scoped memory for tpu_custom_call.1']
    #allocation7 [shape = 'u8[512]{0}', space=vmem, size = 0x400, scoped, tag = 'input window, operand 7, single buffered']
    #allocation8 [shape = 'u8[4096]{0}', space=vmem, size = 0x1000, scoped, tag = 'input window, operand 8, single buffered']
    #allocation9 [shape = 's32[1]{0}', space=sflag, size = 0x4, scoped, tag = 'scoped memory for tpu_custom_call.1']
    #allocation10 [shape = 'u8[8192]{0}', space=vmem, size = 0x2000, scoped, tag = 'input window, operand 10, single buffered']
    #allocation11 [shape = 'u8[32768]{0}', space=vmem, size = 0x8000, scoped, tag = 'output window, operand 0, single buffered']
    %17 = vsyncpa [#allocation3], 0
    %18 = vsyncpa [#allocation6], 0
    %19 = vsyncpa [#allocation9], 0
    %20 = vsyncpa [#allocation4], 0
    // Predicated region
    $region2: #{tpu_custom_call.1} parent=1 // pred_check
      _
    $region3: #{tpu_custom_call.1} parent=1 // pred_check_branch
      %22 = sbr.rel (0) target = $region5
    $region4: #{tpu_custom_call.1} parent=1 // pred_region
      _
    $region5: #{tpu_custom_call.1} parent=1 // pred_fallthru
      _
    // Predicated region
    $region6: #{tpu_custom_call.1} parent=1 // pred_check
      _
    $region7: #{tpu_custom_call.1} parent=1 // pred_check_branch
      %24 = sbr.rel (0) target = $region9
    $region8: #{tpu_custom_call.1} parent=1 // pred_region
      _
    $region9: #{tpu_custom_call.1} parent=1 // pred_fallthru
      _
    // Predicated region
    $region10: #{tpu_custom_call.1} parent=1 // pred_check
      _
    $region11: #{tpu_custom_call.1} parent=1 // pred_check_branch
      %26 = sbr.rel (0) target = $region13
    $region12: #{tpu_custom_call.1} parent=1 // pred_region
      %s28 = ssub.s32 128, 128
      %29 = vsyncadd [#allocation3], %s28
      %s30 = sshll.u32 [#allocation2], 4
      %s31 = int_to_ptr.vmem [resolvable:$true] %s30
      %36 = dma.hbm_to_vmem [thread:$0]  %s2, 128, %s31, [#allocation3], 64, 64, 4
    $region13: #{tpu_custom_call.1} parent=1 // pred_fallthru
      _
    // Predicated region
    $region14: #{tpu_custom_call.1} parent=1 // pred_check
      _
    $region15: #{tpu_custom_call.1} parent=1 // pred_check_branch
      %38 = sbr.rel (0) target = $region17
    $region16: #{tpu_custom_call.1} parent=1 // pred_region
      _
    $region17: #{tpu_custom_call.1} parent=1 // pred_fallthru
      _
    // Predicated region
    $region18: #{tpu_custom_call.1} parent=1 // pred_check
      _
    $region19: #{tpu_custom_call.1} parent=1 // pred_check_branch
      %40 = sbr.rel (0) target = $region21
    $region20: #{tpu_custom_call.1} parent=1 // pred_region
      _
    $region21: #{tpu_custom_call.1} parent=1 // pred_fallthru
      _
    // Predicated region
    $region22: #{tpu_custom_call.1} parent=1 // pred_check
      _
    $region23: #{tpu_custom_call.1} parent=1 // pred_check_branch
      %42 = sbr.rel (0) target = $region25
    $region24: #{tpu_custom_call.1} parent=1 // pred_region
      _
    $region25: #{tpu_custom_call.1} parent=1 // pred_fallthru
      _
    // Predicated region
    $region26: #{tpu_custom_call.1} parent=1 // pred_check
      _
    $region27: #{tpu_custom_call.1} parent=1 // pred_check_branch
      %44 = sbr.rel (0) target = $region29
    $region28: #{tpu_custom_call.1} parent=1 // pred_region
      %s46 = ssub.s32 16, 16
      %47 = vsyncadd [#allocation6], %s46
      %s49 = sshll.u32 [#allocation5], 4
      %s50 = int_to_ptr.vmem [resolvable:$true] %s49
      %52 = dma.hbm_to_vmem [thread:$0]  %s6, 16, %s50, [#allocation6]
    $region29: #{tpu_custom_call.1} parent=1 // pred_fallthru
      _
    // Predicated region
    $region30: #{tpu_custom_call.1} parent=1 // pred_check
      _
    $region31: #{tpu_custom_call.1} parent=1 // pred_check_branch
      %54 = sbr.rel (0) target = $region33
    $region32: #{tpu_custom_call.1} parent=1 // pred_region
      %s56 = ssub.s32 16, 16
      %57 = vsyncadd [#allocation6], %s56
      %s59 = sshll.u32 [#allocation7], 4
      %s60 = int_to_ptr.vmem [resolvable:$true] %s59
      %62 = dma.hbm_to_vmem [thread:$0]  %s7, 16, %s60, [#allocation6]
    $region33: #{tpu_custom_call.1} parent=1 // pred_fallthru
      _
    // Predicated region
    $region34: #{tpu_custom_call.1} parent=1 // pred_check
      _
    $region35: #{tpu_custom_call.1} parent=1 // pred_check_branch
      %64 = sbr.rel (0) target = $region37
    $region36: #{tpu_custom_call.1} parent=1 // pred_region
      %s66 = ssub.s32 128, 128
      %67 = vsyncadd [#allocation9], %s66
      %s68 = sshll.u32 [#allocation8], 4
      %s69 = int_to_ptr.vmem [resolvable:$true] %s68
      %74 = dma.hbm_to_vmem [thread:$0]  %s8, 128, %s69, [#allocation9], 64, 64, 4
    $region37: #{tpu_custom_call.1} parent=1 // pred_fallthru
      _
    // Predicated region
    $region38: #{tpu_custom_call.1} parent=1 // pred_check
      _
    $region39: #{tpu_custom_call.1} parent=1 // pred_check_branch
      %76 = sbr.rel (0) target = $region41
    $region40: #{tpu_custom_call.1} parent=1 // pred_region
      _
    $region41: #{tpu_custom_call.1} parent=1 // pred_fallthru
      _
    // Predicated region
    $region42: #{tpu_custom_call.1} parent=1 // pred_check
      _
    $region43: #{tpu_custom_call.1} parent=1 // pred_check_branch
      %78 = sbr.rel (0) target = $region45
    $region44: #{tpu_custom_call.1} parent=1 // pred_region
      %s80 = ssub.s32 256, 256
      %81 = vsyncadd [#allocation9], %s80
      %s82 = sshll.u32 [#allocation10], 4
      %s83 = int_to_ptr.vmem [resolvable:$true] %s82
      %88 = dma.hbm_to_vmem [thread:$0]  %s10, 256, %s83, [#allocation9], 64, 64, 4
    $region45: #{tpu_custom_call.1} parent=1 // pred_fallthru
      _
    // Predicated region
    $region46: #{tpu_custom_call.1} parent=1 // pred_check
      _
    $region47: #{tpu_custom_call.1} parent=1 // pred_check_branch
      %90 = sbr.rel (0) target = $region49
    $region48: #{tpu_custom_call.1} parent=1 // pred_region
      _
    $region49: #{tpu_custom_call.1} parent=1 // pred_fallthru
      _
    // Predicated region
    $region50: #{tpu_custom_call.1} parent=1 // pred_check
      _
    $region51: #{tpu_custom_call.1} parent=1 // pred_check_branch
      %92 = sbr.rel (0) target = $region53
    $region52: #{tpu_custom_call.1} parent=1 // pred_region
      %93 = dma.done [#allocation3], 128
    $region53: #{tpu_custom_call.1} parent=1 // pred_fallthru
      _
    // Predicated region
    $region54: #{tpu_custom_call.1} parent=1 // pred_check
      _
    $region55: #{tpu_custom_call.1} parent=1 // pred_check_branch
      %95 = sbr.rel (0) target = $region57
    $region56: #{tpu_custom_call.1} parent=1 // pred_region
      %96 = dma.done [#allocation6], 16
    $region57: #{tpu_custom_call.1} parent=1 // pred_fallthru
      _
    // Predicated region
    $region58: #{tpu_custom_call.1} parent=1 // pred_check
      _
    $region59: #{tpu_custom_call.1} parent=1 // pred_check_branch
      %98 = sbr.rel (0) target = $region61
    $region60: #{tpu_custom_call.1} parent=1 // pred_region
      %99 = dma.done [#allocation6], 16
    $region61: #{tpu_custom_call.1} parent=1 // pred_fallthru
      _
    // Predicated region
    $region62: #{tpu_custom_call.1} parent=1 // pred_check
      _
    $region63: #{tpu_custom_call.1} parent=1 // pred_check_branch
      %101 = sbr.rel (0) target = $region65
    $region64: #{tpu_custom_call.1} parent=1 // pred_region
      %102 = dma.done [#allocation9], 128
    $region65: #{tpu_custom_call.1} parent=1 // pred_fallthru
      _
    // Predicated region
    $region66: #{tpu_custom_call.1} parent=1 // pred_check
      _
    $region67: #{tpu_custom_call.1} parent=1 // pred_check_branch
      %104 = sbr.rel (0) target = $region69
    $region68: #{tpu_custom_call.1} parent=1 // pred_region
      %105 = dma.done [#allocation9], 256
    $region69: #{tpu_custom_call.1} parent=1 // pred_fallthru
      _
    %v107 = vld [vmem:[%s0] sm:$0xf]
    %v108 = vld [vmem:[%s0 + $0x4] sm:$0xf]
    %v109 = vld [vmem:[%s0 + $0x8] sm:$0xf]
    %v110 = vld [vmem:[%s0 + $0xc] sm:$0xf]
    %v111 = vld [vmem:[%s0 + $0x10] sm:$0xf]
    %v112 = vld [vmem:[%s0 + $0x14] sm:$0xf]
    %v113 = vld [vmem:[%s0 + $0x18] sm:$0xf]
    %v114 = vld [vmem:[%s0 + $0x1c] sm:$0xf]
    %v115 = vld [vmem:[%s1] sm:$0xf]
    %v116 = vld [vmem:[%s1 + $0x4] sm:$0xf]
    %v117 = vld [vmem:[%s1 + $0x8] sm:$0xf]
    %v118 = vld [vmem:[%s1 + $0xc] sm:$0xf]
    %v119 = vld [vmem:[%s1 + $0x10] sm:$0xf]
    %v120 = vld [vmem:[%s1 + $0x14] sm:$0xf]
    %v121 = vld [vmem:[%s1 + $0x18] sm:$0xf]
    %v122 = vld [vmem:[%s1 + $0x1c] sm:$0xf]
    %v131 = vunpack.c.l.b16 %v107
    %v132 = vunpack.c.l.b16 %v108
    %v133 = vunpack.c.l.b16 %v109
    %v134 = vunpack.c.l.b16 %v110
    %v135 = vunpack.c.l.b16 %v111
    %v136 = vunpack.c.l.b16 %v112
    %v137 = vunpack.c.l.b16 %v113
    %v138 = vunpack.c.l.b16 %v114
    %v139 = vpack.c.b16 %v132, %v131
    %v140 = vpack.c.b16 %v134, %v133
    %v141 = vpack.c.b16 %v136, %v135
    %v142 = vpack.c.b16 %v138, %v137
    %v151 = vunpack.c.l.b16 %v115
    %v152 = vunpack.c.l.b16 %v116
    %v153 = vunpack.c.l.b16 %v117
    %v154 = vunpack.c.l.b16 %v118
    %v155 = vunpack.c.l.b16 %v119
    %v156 = vunpack.c.l.b16 %v120
    %v157 = vunpack.c.l.b16 %v121
    %v158 = vunpack.c.l.b16 %v122
    %v159 = vpack.c.b16 %v152, %v151
    %v160 = vpack.c.b16 %v154, %v153
    %v161 = vpack.c.b16 %v156, %v155
    %v162 = vpack.c.b16 %v158, %v157
    %vm167 = vcmask 523264
    %v169 = vsel %vm167, %v139, 0
    %v172 = vsel %vm167, %v140, 0
    %v175 = vsel %vm167, %v141, 0
    %v178 = vsel %vm167, %v142, 0
    %180 = vmatprep.subr.bf16.mxu0 0
    %181 = vmatpush1.bf16.msra.mxu0 %v159
    %182 = vmatprep.subr.bf16.mxu0 0
    %183 = vmatpush1.bf16.msra.mxu0 %v160
    %184 = vmatprep.subr.bf16.mxu0 0
    %185 = vmatpush1.bf16.msra.mxu0 %v161
    %186 = vmatprep.subr.bf16.mxu0 0
    %187 = vmatpush1.bf16.msra.mxu0 %v162
    %188 = vmatprep.subr.bf16.mxu0 0
    %189 = vmatpush1.bf16.msra.mxu0 0
    %190 = vmatprep.subr.bf16.mxu0 0
    %191 = vmatpush1.bf16.msra.mxu0 0
    %192 = vmatprep.subr.bf16.mxu0 0
    %193 = vmatpush1.bf16.msra.mxu0 0
    %194 = vmatprep.subr.bf16.mxu0 0
    %195 = vmatpush1.bf16.msra.mxu0 0
    %196 = vmatprep.subr.bf16.mxu0 0
    %197 = vmatpush1.bf16.msra.mxu0 0
    %198 = vmatprep.subr.bf16.mxu0 0
    %199 = vmatpush1.bf16.msra.mxu0 0
    %200 = vmatprep.subr.bf16.mxu0 0
    %201 = vmatpush1.bf16.msra.mxu0 0
    %202 = vmatprep.subr.bf16.mxu0 0
    %203 = vmatpush1.bf16.msra.mxu0 0
    %204 = vmatprep.subr.bf16.mxu0 0
    %205 = vmatpush1.bf16.msra.mxu0 0
    %206 = vmatprep.subr.bf16.mxu0 0
    %207 = vmatpush1.bf16.msra.mxu0 0
    %208 = vmatprep.subr.bf16.mxu0 0
    %209 = vmatpush1.bf16.msra.mxu0 0
    %210 = vmatprep.subr.bf16.mxu0 0
    %211 = vmatpush1.bf16.msra.mxu0 0
    %212 = vmatprep.mubr.bf16.mxu0 0
    %213 = vmatmul.mubr.bf16.gmra.mrb[0].mxu0 %v169
    %v214 = vpop.f32.mrb[0].mxu0
    %v215 = vadd.f32 0.0, %v214
    %v216 = vpop.f32.mrb[0].mxu0
    %v217 = vpop.f32.mrb[0].mxu0
    %v218 = vadd.f32 0.0, %v217
    %v219 = vpop.f32.mrb[0].mxu0
    %220 = vmatprep.mubr.bf16.mxu0 0
    %221 = vmatmul.mubr.bf16.gmra.mrb[0].mxu0 %v172
    %v222 = vpop.f32.mrb[0].mxu0
    %v223 = vadd.f32 0.0, %v222
    %v224 = vpop.f32.mrb[0].mxu0
    %v225 = vpop.f32.mrb[0].mxu0
    %v226 = vadd.f32 0.0, %v225
    %v227 = vpop.f32.mrb[0].mxu0
    %228 = vmatprep.mubr.bf16.mxu0 0
    %229 = vmatmul.mubr.bf16.gmra.mrb[0].mxu0 %v175
    %v230 = vpop.f32.mrb[0].mxu0
    %v231 = vadd.f32 0.0, %v230
    %v232 = vpop.f32.mrb[0].mxu0
    %v233 = vpop.f32.mrb[0].mxu0
    %v234 = vadd.f32 0.0, %v233
    %v235 = vpop.f32.mrb[0].mxu0
    %236 = vmatprep.mubr.bf16.mxu0 0
    %237 = vmatmul.mubr.bf16.gmra.mrb[0].mxu0 %v178
    %v238 = vpop.f32.mrb[0].mxu0
    %v239 = vadd.f32 0.0, %v238
    %v240 = vpop.f32.mrb[0].mxu0
    %v241 = vpop.f32.mrb[0].mxu0
    %v242 = vadd.f32 0.0, %v241
    %v243 = vpop.f32.mrb[0].mxu0
    %244 = vdwg.mxu0
    %v245 = vpack.c.bf16 %v218, %v215
    %v246 = vpack.c.bf16 %v226, %v223
    %v247 = vpack.c.bf16 %v234, %v231
    %v248 = vpack.c.bf16 %v242, %v239
    %v249 = vld [vmem:[#allocation2] sm:$0xf]
    %v250 = vld [vmem:[#allocation2 + $0x4] sm:$0xf]
    %v253 = vunpack.c.l.b16 %v249
    %v254 = vunpack.c.l.b16 %v250
    %v255 = vpack.c.b16 %v254, %v253
    %vm257 = vcmask 130048
    %v259 = vsel %vm257, %v245, 0
    %v262 = vsel %vm257, %v246, 0
    %v265 = vsel %vm257, %v247, 0
    %v268 = vsel %vm257, %v248, 0
    %270 = vmatprep.subr.bf16.mxu0 0
    %271 = vmatpush1.bf16.msra.mxu0 %v255
    %272 = vmatprep.subr.bf16.mxu0 0
    %273 = vmatpush1.bf16.msra.mxu0 0
    %274 = vmatprep.subr.bf16.mxu0 0
    %275 = vmatpush1.bf16.msra.mxu0 0
    %276 = vmatprep.subr.bf16.mxu0 0
    %277 = vmatpush1.bf16.msra.mxu0 0
    %278 = vmatprep.subr.bf16.mxu0 0
    %279 = vmatpush1.bf16.msra.mxu0 0
    %280 = vmatprep.subr.bf16.mxu0 0
    %281 = vmatpush1.bf16.msra.mxu0 0
    %282 = vmatprep.subr.bf16.mxu0 0
    %283 = vmatpush1.bf16.msra.mxu0 0
    %284 = vmatprep.subr.bf16.mxu0 0
    %285 = vmatpush1.bf16.msra.mxu0 0
    %286 = vmatprep.subr.bf16.mxu0 0
    %287 = vmatpush1.bf16.msra.mxu0 0
    %288 = vmatprep.subr.bf16.mxu0 0
    %289 = vmatpush1.bf16.msra.mxu0 0
    %290 = vmatprep.subr.bf16.mxu0 0
    %291 = vmatpush1.bf16.msra.mxu0 0
    %292 = vmatprep.subr.bf16.mxu0 0
    %293 = vmatpush1.bf16.msra.mxu0 0
    %294 = vmatprep.subr.bf16.mxu0 0
    %295 = vmatpush1.bf16.msra.mxu0 0
    %296 = vmatprep.subr.bf16.mxu0 0
    %297 = vmatpush1.bf16.msra.mxu0 0
    %298 = vmatprep.subr.bf16.mxu0 0
    %299 = vmatpush1.bf16.msra.mxu0 0
    %300 = vmatprep.subr.bf16.mxu0 0
    %301 = vmatpush1.bf16.msra.mxu0 0
    %302 = vmatprep.mubr.bf16.mxu0 0
    %303 = vmatmul.mubr.bf16.gmra.mrb[0].mxu0 %v259
    %v304 = vpop.f32.mrb[0].mxu0
    %v305 = vadd.f32 0.0, %v304
    %v306 = vpop.f32.mrb[0].mxu0
    %v307 = vpop.f32.mrb[0].mxu0
    %v308 = vadd.f32 0.0, %v307
    %v309 = vpop.f32.mrb[0].mxu0
    %310 = vmatprep.mubr.bf16.mxu0 0
    %311 = vmatmul.mubr.bf16.gmra.mrb[0].mxu0 %v262
    %v312 = vpop.f32.mrb[0].mxu0
    %v313 = vadd.f32 0.0, %v312
    %v314 = vpop.f32.mrb[0].mxu0
    %v315 = vpop.f32.mrb[0].mxu0
    %v316 = vadd.f32 0.0, %v315
    %v317 = vpop.f32.mrb[0].mxu0
    %318 = vmatprep.mubr.bf16.mxu0 0
    %319 = vmatmul.mubr.bf16.gmra.mrb[0].mxu0 %v265
    %v320 = vpop.f32.mrb[0].mxu0
    %v321 = vadd.f32 0.0, %v320
    %v322 = vpop.f32.mrb[0].mxu0
    %v323 = vpop.f32.mrb[0].mxu0
    %v324 = vadd.f32 0.0, %v323
    %v325 = vpop.f32.mrb[0].mxu0
    %326 = vmatprep.mubr.bf16.mxu0 0
    %327 = vmatmul.mubr.bf16.gmra.mrb[0].mxu0 %v268
    %v328 = vpop.f32.mrb[0].mxu0
    %v329 = vadd.f32 0.0, %v328
    %v330 = vpop.f32.mrb[0].mxu0
    %v331 = vpop.f32.mrb[0].mxu0
    %v332 = vadd.f32 0.0, %v331
    %v333 = vpop.f32.mrb[0].mxu0
    %334 = vdwg.mxu0
    %vm335 = vcmask 261120
    %v336 = vsel %vm335, %v305, 0.0
    %v337 = vsel %vm335, %v308, 0.0
    %v338 = vadd.f32 %v336, %v337
    %v339 = vsel %vm335, %v313, 0.0
    %v340 = vadd.f32 %v338, %v339
    %v341 = vsel %vm335, %v316, 0.0
    %v342 = vadd.f32 %v340, %v341
    %v343 = vsel %vm335, %v321, 0.0
    %v344 = vadd.f32 %v342, %v343
    %v345 = vsel %vm335, %v324, 0.0
    %v346 = vadd.f32 %v344, %v345
    %v347 = vsel %vm335, %v329, 0.0
    %v348 = vadd.f32 %v346, %v347
    %v349 = vsel %vm335, %v332, 0.0
    %v350 = vadd.f32 %v348, %v349
    %v351 = vrot.slane %v350, 4
    %v352 = vadd.f32 %v350, %v351
    %v353 = vrot.slane %v352, 2
    %v354 = vadd.f32 %v352, %v353
    %v355 = vrot.slane %v354, 1
    %v356 = vadd.f32 %v354, %v355
    %v357 = vmul.f32 %v356, 0.015625
    %v358 = vmul.f32 %v305, %v305
    %v359 = vmul.f32 %v308, %v308
    %v360 = vmul.f32 %v313, %v313
    %v361 = vmul.f32 %v316, %v316
    %v362 = vmul.f32 %v321, %v321
    %v363 = vmul.f32 %v324, %v324
    %v364 = vmul.f32 %v329, %v329
    %v365 = vmul.f32 %v332, %v332
    %v366 = vsel %vm335, %v358, 0.0
    %v367 = vsel %vm335, %v359, 0.0
    %v368 = vadd.f32 %v366, %v367
    %v369 = vsel %vm335, %v360, 0.0
    %v370 = vadd.f32 %v368, %v369
    %v371 = vsel %vm335, %v361, 0.0
    %v372 = vadd.f32 %v370, %v371
    %v373 = vsel %vm335, %v362, 0.0
    %v374 = vadd.f32 %v372, %v373
    %v375 = vsel %vm335, %v363, 0.0
    %v376 = vadd.f32 %v374, %v375
    %v377 = vsel %vm335, %v364, 0.0
    %v378 = vadd.f32 %v376, %v377
    %v379 = vsel %vm335, %v365, 0.0
    %v380 = vadd.f32 %v378, %v379
    %v381 = vrot.slane %v380, 4
    %v382 = vadd.f32 %v380, %v381
    %v383 = vrot.slane %v382, 2
    %v384 = vadd.f32 %v382, %v383
    %v385 = vrot.slane %v384, 1
    %v386 = vadd.f32 %v384, %v385
    %v387 = vmul.f32 %v386, 0.015625
    %v388 = vmul.f32 %v357, %v357
    %v389 = vsub.f32 %v387, %v388
    %v390 = vmax.f32 %v389, 0.0
    %v391 = vld [vmem:[%s3] sm:$0x1]
    %v392 = vadd.f32 %v390, 1e-05
    %v393 = vrsqrt.pop %v392
    %v394 = vmul.f32 %v391, %v393
    %v395 = vld [vmem:[%s4] sm:$0x1]
    %v396 = vmul.f32 %v357, %v394
    %v397 = vsub.f32 %v395, %v396
    %v399 = vlaneseq
    %v400 = vshrl.u32 %v399, 7
    %v401 = vsub.s32 0, %v400
    %v402 = vrot.slane %v394, %v401
    %v404 = vmul.f32 %v305, %v402
    %v405 = vmul.f32 %v308, %v402
    %v406 = vmul.f32 %v313, %v402
    %v407 = vmul.f32 %v316, %v402
    %v408 = vmul.f32 %v321, %v402
    %v409 = vmul.f32 %v324, %v402
    %v410 = vmul.f32 %v329, %v402
    %v411 = vmul.f32 %v332, %v402
    %v413 = vlaneseq
    %v414 = vshrl.u32 %v413, 7
    %v415 = vsub.s32 0, %v414
    %v416 = vrot.slane %v397, %v415
    %v418 = vadd.f32 %v404, %v416
    %v419 = vadd.f32 %v405, %v416
    %v420 = vadd.f32 %v406, %v416
    %v421 = vadd.f32 %v407, %v416
    %v422 = vadd.f32 %v408, %v416
    %v423 = vadd.f32 %v409, %v416
    %v424 = vadd.f32 %v410, %v416
    %v425 = vadd.f32 %v411, %v416
    %v426 = vpack.c.bf16 %v419, %v418
    %v427 = vpack.c.bf16 %v421, %v420
    %v428 = vpack.c.bf16 %v423, %v422
    %v429 = vpack.c.bf16 %v425, %v424
    %v430 = vld [vmem:[%s5] sm:$0xf]
    %v431 = vld [vmem:[%s5 + $0x4] sm:$0xf]
    %v432 = vld [vmem:[%s5 + $0x8] sm:$0xf]
    %v433 = vld [vmem:[%s5 + $0xc] sm:$0xf]
    %v438 = vunpack.c.l.b16 %v430
    %v439 = vunpack.c.l.b16 %v431
    %v440 = vunpack.c.l.b16 %v432
    %v441 = vunpack.c.l.b16 %v433
    %v442 = vpack.c.b16 %v439, %v438
    %v443 = vpack.c.b16 %v441, %v440
    %v447 = vsel %vm335, %v426, 0
    %v450 = vsel %vm335, %v427, 0
    %v453 = vsel %vm335, %v428, 0
    %v456 = vsel %vm335, %v429, 0
    %458 = vmatprep.subr.bf16.mxu0 0
    %459 = vmatpush1.bf16.msra.mxu0 %v442
    %460 = vmatprep.subr.bf16.mxu0 0
    %461 = vmatpush1.bf16.msra.mxu0 %v443
    %462 = vmatprep.subr.bf16.mxu0 0
    %463 = vmatpush1.bf16.msra.mxu0 0
    %464 = vmatprep.subr.bf16.mxu0 0
    %465 = vmatpush1.bf16.msra.mxu0 0
    %466 = vmatprep.subr.bf16.mxu0 0
    %467 = vmatpush1.bf16.msra.mxu0 0
    %468 = vmatprep.subr.bf16.mxu0 0
    %469 = vmatpush1.bf16.msra.mxu0 0
    %470 = vmatprep.subr.bf16.mxu0 0
    %471 = vmatpush1.bf16.msra.mxu0 0
    %472 = vmatprep.subr.bf16.mxu0 0
    %473 = vmatpush1.bf16.msra.mxu0 0
    %474 = vmatprep.subr.bf16.mxu0 0
    %475 = vmatpush1.bf16.msra.mxu0 0
    %476 = vmatprep.subr.bf16.mxu0 0
    %477 = vmatpush1.bf16.msra.mxu0 0
    %478 = vmatprep.subr.bf16.mxu0 0
    %479 = vmatpush1.bf16.msra.mxu0 0
    %480 = vmatprep.subr.bf16.mxu0 0
    %481 = vmatpush1.bf16.msra.mxu0 0
    %482 = vmatprep.subr.bf16.mxu0 0
    %483 = vmatpush1.bf16.msra.mxu0 0
    %484 = vmatprep.subr.bf16.mxu0 0
    %485 = vmatpush1.bf16.msra.mxu0 0
    %486 = vmatprep.subr.bf16.mxu0 0
    %487 = vmatpush1.bf16.msra.mxu0 0
    %488 = vmatprep.subr.bf16.mxu0 0
    %489 = vmatpush1.bf16.msra.mxu0 0
    %490 = vmatprep.mubr.bf16.mxu0 0
    %491 = vmatmul.mubr.bf16.gmra.mrb[0].mxu0 %v447
    %v492 = vpop.f32.mrb[0].mxu0
    %v493 = vadd.f32 0.0, %v492
    %v494 = vpop.f32.mrb[0].mxu0
    %v495 = vpop.f32.mrb[0].mxu0
    %v496 = vadd.f32 0.0, %v495
    %v497 = vpop.f32.mrb[0].mxu0
    %498 = vmatprep.mubr.bf16.mxu0 0
    %499 = vmatmul.mubr.bf16.gmra.mrb[0].mxu0 %v450
    %v500 = vpop.f32.mrb[0].mxu0
    %v501 = vadd.f32 0.0, %v500
    %v502 = vpop.f32.mrb[0].mxu0
    %v503 = vpop.f32.mrb[0].mxu0
    %v504 = vadd.f32 0.0, %v503
    %v505 = vpop.f32.mrb[0].mxu0
    %506 = vmatprep.mubr.bf16.mxu0 0
    %507 = vmatmul.mubr.bf16.gmra.mrb[0].mxu0 %v453
    %v508 = vpop.f32.mrb[0].mxu0
    %v509 = vadd.f32 0.0, %v508
    %v510 = vpop.f32.mrb[0].mxu0
    %v511 = vpop.f32.mrb[0].mxu0
    %v512 = vadd.f32 0.0, %v511
    %v513 = vpop.f32.mrb[0].mxu0
    %514 = vmatprep.mubr.bf16.mxu0 0
    %515 = vmatmul.mubr.bf16.gmra.mrb[0].mxu0 %v456
    %v516 = vpop.f32.mrb[0].mxu0
    %v517 = vadd.f32 0.0, %v516
    %v518 = vpop.f32.mrb[0].mxu0
    %v519 = vpop.f32.mrb[0].mxu0
    %v520 = vadd.f32 0.0, %v519
    %v521 = vpop.f32.mrb[0].mxu0
    %522 = vdwg.mxu0
    %v523 = vpack.c.bf16 %v496, %v493
    %v524 = vpack.c.bf16 %v504, %v501
    %v525 = vpack.c.bf16 %v512, %v509
    %v526 = vpack.c.bf16 %v520, %v517
    %527 = vmatprep.subr.bf16.mxu0 0
    %528 = vmatpush1.bf16.msra.mxu0 %v523
    %529 = vmatprep.subr.bf16.mxu0 0
    %530 = vmatpush1.bf16.msra.mxu0 %v524
    %531 = vmatprep.subr.bf16.mxu0 0
    %532 = vmatpush1.bf16.msra.mxu0 %v525
    %533 = vmatprep.subr.bf16.mxu0 0
    %534 = vmatpush1.bf16.msra.mxu0 %v526
    %535 = vmatprep.subr.bf16.mxu0 0
    %536 = vmatpush1.bf16.msra.mxu0 0
    %537 = vmatprep.subr.bf16.mxu0 0
    %538 = vmatpush1.bf16.msra.mxu0 0
    %539 = vmatprep.subr.bf16.mxu0 0
    %540 = vmatpush1.bf16.msra.mxu0 0
    %541 = vmatprep.subr.bf16.mxu0 0
    %542 = vmatpush1.bf16.msra.mxu0 0
    %543 = vmatprep.subr.bf16.mxu0 0
    %544 = vmatpush1.bf16.msra.mxu0 0
    %545 = vmatprep.subr.bf16.mxu0 0
    %546 = vmatpush1.bf16.msra.mxu0 0
    %547 = vmatprep.subr.bf16.mxu0 0
    %548 = vmatpush1.bf16.msra.mxu0 0
    %549 = vmatprep.subr.bf16.mxu0 0
    %550 = vmatpush1.bf16.msra.mxu0 0
    %551 = vmatprep.subr.bf16.mxu0 0
    %552 = vmatpush1.bf16.msra.mxu0 0
    %553 = vmatprep.subr.bf16.mxu0 0
    %554 = vmatpush1.bf16.msra.mxu0 0
    %555 = vmatprep.subr.bf16.mxu0 0
    %556 = vmatpush1.bf16.msra.mxu0 0
    %557 = vmatprep.subr.bf16.mxu0 0
    %558 = vmatpush1.bf16.msra.mxu0 0
    %559 = vmatprep.mubr.bf16.mxu0 0
    %560 = vmatmul.mubr.bf16.gmra.mrb[0].mxu0 %v169
    %v561 = vpop.f32.mrb[0].mxu0
    %v562 = vadd.f32 0.0, %v561
    %v563 = vpop.f32.mrb[0].mxu0
    %v564 = vpop.f32.mrb[0].mxu0
    %v565 = vadd.f32 0.0, %v564
    %v566 = vpop.f32.mrb[0].mxu0
    %567 = vmatprep.mubr.bf16.mxu0 0
    %568 = vmatmul.mubr.bf16.gmra.mrb[0].mxu0 %v172
    %v569 = vpop.f32.mrb[0].mxu0
    %v570 = vadd.f32 0.0, %v569
    %v571 = vpop.f32.mrb[0].mxu0
    %v572 = vpop.f32.mrb[0].mxu0
    %v573 = vadd.f32 0.0, %v572
    %v574 = vpop.f32.mrb[0].mxu0
    %575 = vmatprep.mubr.bf16.mxu0 0
    %576 = vmatmul.mubr.bf16.gmra.mrb[0].mxu0 %v175
    %v577 = vpop.f32.mrb[0].mxu0
    %v578 = vadd.f32 0.0, %v577
    %v579 = vpop.f32.mrb[0].mxu0
    %v580 = vpop.f32.mrb[0].mxu0
    %v581 = vadd.f32 0.0, %v580
    %v582 = vpop.f32.mrb[0].mxu0
    %583 = vmatprep.mubr.bf16.mxu0 0
    %584 = vmatmul.mubr.bf16.gmra.mrb[0].mxu0 %v178
    %v585 = vpop.f32.mrb[0].mxu0
    %v586 = vadd.f32 0.0, %v585
    %v587 = vpop.f32.mrb[0].mxu0
    %v588 = vpop.f32.mrb[0].mxu0
    %v589 = vadd.f32 0.0, %v588
    %v590 = vpop.f32.mrb[0].mxu0
    %591 = vdwg.mxu0
    %v592 = vsel %vm335, %v562, 0.0
    %v593 = vsel %vm335, %v565, 0.0
    %v594 = vadd.f32 %v592, %v593
    %v595 = vsel %vm335, %v570, 0.0
    %v596 = vadd.f32 %v594, %v595
    %v597 = vsel %vm335, %v573, 0.0
    %v598 = vadd.f32 %v596, %v597
    %v599 = vsel %vm335, %v578, 0.0
    %v600 = vadd.f32 %v598, %v599
    %v601 = vsel %vm335, %v581, 0.0
    %v602 = vadd.f32 %v600, %v601
    %v603 = vsel %vm335, %v586, 0.0
    %v604 = vadd.f32 %v602, %v603
    %v605 = vsel %vm335, %v589, 0.0
    %v606 = vadd.f32 %v604, %v605
    %v607 = vrot.slane %v606, 4
    %v608 = vadd.f32 %v606, %v607
    %v609 = vrot.slane %v608, 2
    %v610 = vadd.f32 %v608, %v609
    %v611 = vrot.slane %v610, 1
    %v612 = vadd.f32 %v610, %v611
    %v613 = vmul.f32 %v612, 0.015625
    %v614 = vmul.f32 %v562, %v562
    %v615 = vmul.f32 %v565, %v565
    %v616 = vmul.f32 %v570, %v570
    %v617 = vmul.f32 %v573, %v573
    %v618 = vmul.f32 %v578, %v578
    %v619 = vmul.f32 %v581, %v581
    %v620 = vmul.f32 %v586, %v586
    %v621 = vmul.f32 %v589, %v589
    %v622 = vsel %vm335, %v614, 0.0
    %v623 = vsel %vm335, %v615, 0.0
    %v624 = vadd.f32 %v622, %v623
    %v625 = vsel %vm335, %v616, 0.0
    %v626 = vadd.f32 %v624, %v625
    %v627 = vsel %vm335, %v617, 0.0
    %v628 = vadd.f32 %v626, %v627
    %v629 = vsel %vm335, %v618, 0.0
    %v630 = vadd.f32 %v628, %v629
    %v631 = vsel %vm335, %v619, 0.0
    %v632 = vadd.f32 %v630, %v631
    %v633 = vsel %vm335, %v620, 0.0
    %v634 = vadd.f32 %v632, %v633
    %v635 = vsel %vm335, %v621, 0.0
    %v636 = vadd.f32 %v634, %v635
    %v637 = vrot.slane %v636, 4
    %v638 = vadd.f32 %v636, %v637
    %v639 = vrot.slane %v638, 2
    %v640 = vadd.f32 %v638, %v639
    %v641 = vrot.slane %v640, 1
    %v642 = vadd.f32 %v640, %v641
    %v643 = vmul.f32 %v642, 0.015625
    %v644 = vmul.f32 %v613, %v613
    %v645 = vsub.f32 %v643, %v644
    %v646 = vmax.f32 %v645, 0.0
    %v647 = vld [vmem:[#allocation5] sm:$0x1]
    %v648 = vadd.f32 %v646, 1e-05
    %v649 = vrsqrt.pop %v648
    %v650 = vmul.f32 %v647, %v649
    %v651 = vld [vmem:[#allocation7] sm:$0x1]
    %v652 = vmul.f32 %v613, %v650
    %v653 = vsub.f32 %v651, %v652
    %v655 = vlaneseq
    %v656 = vshrl.u32 %v655, 7
    %v657 = vsub.s32 0, %v656
    %v658 = vrot.slane %v650, %v657
    %v660 = vmul.f32 %v562, %v658
    %v661 = vmul.f32 %v565, %v658
    %v662 = vmul.f32 %v570, %v658
    %v663 = vmul.f32 %v573, %v658
    %v664 = vmul.f32 %v578, %v658
    %v665 = vmul.f32 %v581, %v658
    %v666 = vmul.f32 %v586, %v658
    %v667 = vmul.f32 %v589, %v658
    %v669 = vlaneseq
    %v670 = vshrl.u32 %v669, 7
    %v671 = vsub.s32 0, %v670
    %v672 = vrot.slane %v653, %v671
    %v674 = vadd.f32 %v660, %v672
    %v675 = vadd.f32 %v661, %v672
    %v676 = vadd.f32 %v662, %v672
    %v677 = vadd.f32 %v663, %v672
    %v678 = vadd.f32 %v664, %v672
    %v679 = vadd.f32 %v665, %v672
    %v680 = vadd.f32 %v666, %v672
    %v681 = vadd.f32 %v667, %v672
    %v682 = vpack.c.bf16 %v675, %v674
    %v683 = vpack.c.bf16 %v677, %v676
    %v684 = vpack.c.bf16 %v679, %v678
    %v685 = vpack.c.bf16 %v681, %v680
    %v686 = vld [vmem:[#allocation8] sm:$0xf]
    %v687 = vld [vmem:[#allocation8 + $0x4] sm:$0xf]
    %v688 = vld [vmem:[%s9] sm:$0xf]
    %v689 = vld [vmem:[%s9 + $0x4] sm:$0xf]
    %v690 = vld [vmem:[%s9 + $0x8] sm:$0xf]
    %v691 = vld [vmem:[%s9 + $0xc] sm:$0xf]
    %v696 = vunpack.c.l.b16 %v688
    %v697 = vunpack.c.l.b16 %v689
    %v698 = vunpack.c.l.b16 %v690
    %v699 = vunpack.c.l.b16 %v691
    %v700 = vpack.c.b16 %v697, %v696
    %v701 = vpack.c.b16 %v699, %v698
    %704 = vmatprep.subr.bf16.mxu0 0
    %705 = vmatpush1.bf16.msra.mxu0 %v700
    %706 = vmatprep.subr.bf16.mxu0 0
    %707 = vmatpush1.bf16.msra.mxu0 %v701
    %708 = vmatprep.subr.bf16.mxu0 0
    %709 = vmatpush1.bf16.msra.mxu0 0
    %710 = vmatprep.subr.bf16.mxu0 0
    %711 = vmatpush1.bf16.msra.mxu0 0
    %712 = vmatprep.subr.bf16.mxu0 0
    %713 = vmatpush1.bf16.msra.mxu0 0
    %714 = vmatprep.subr.bf16.mxu0 0
    %715 = vmatpush1.bf16.msra.mxu0 0
    %716 = vmatprep.subr.bf16.mxu0 0
    %717 = vmatpush1.bf16.msra.mxu0 0
    %718 = vmatprep.subr.bf16.mxu0 0
    %719 = vmatpush1.bf16.msra.mxu0 0
    %720 = vmatprep.subr.bf16.mxu0 0
    %721 = vmatpush1.bf16.msra.mxu0 0
    %722 = vmatprep.subr.bf16.mxu0 0
    %723 = vmatpush1.bf16.msra.mxu0 0
    %724 = vmatprep.subr.bf16.mxu0 0
    %725 = vmatpush1.bf16.msra.mxu0 0
    %726 = vmatprep.subr.bf16.mxu0 0
    %727 = vmatpush1.bf16.msra.mxu0 0
    %728 = vmatprep.subr.bf16.mxu0 0
    %729 = vmatpush1.bf16.msra.mxu0 0
    %730 = vmatprep.subr.bf16.mxu0 0
    %731 = vmatpush1.bf16.msra.mxu0 0
    %732 = vmatprep.subr.bf16.mxu0 0
    %733 = vmatpush1.bf16.msra.mxu0 0
    %734 = vmatprep.subr.bf16.mxu0 0
    %735 = vmatpush1.bf16.msra.mxu0 0
    %736 = vmatprep.mubr.bf16.mxu0 0
    %737 = vmatmul.mubr.bf16.gmra.mrb[0].mxu0 %v447
    %v738 = vpop.f32.mrb[0].mxu0
    %v739 = vadd.f32 0.0, %v738
    %v740 = vpop.f32.mrb[0].mxu0
    %v741 = vpop.f32.mrb[0].mxu0
    %v742 = vadd.f32 0.0, %v741
    %v743 = vpop.f32.mrb[0].mxu0
    %744 = vmatprep.mubr.bf16.mxu0 0
    %745 = vmatmul.mubr.bf16.gmra.mrb[0].mxu0 %v450
    %v746 = vpop.f32.mrb[0].mxu0
    %v747 = vadd.f32 0.0, %v746
    %v748 = vpop.f32.mrb[0].mxu0
    %v749 = vpop.f32.mrb[0].mxu0
    %v750 = vadd.f32 0.0, %v749
    %v751 = vpop.f32.mrb[0].mxu0
    %752 = vmatprep.mubr.bf16.mxu0 0
    %753 = vmatmul.mubr.bf16.gmra.mrb[0].mxu0 %v453
    %v754 = vpop.f32.mrb[0].mxu0
    %v755 = vadd.f32 0.0, %v754
    %v756 = vpop.f32.mrb[0].mxu0
    %v757 = vpop.f32.mrb[0].mxu0
    %v758 = vadd.f32 0.0, %v757
    %v759 = vpop.f32.mrb[0].mxu0
    %760 = vmatprep.mubr.bf16.mxu0 0
    %761 = vmatmul.mubr.bf16.gmra.mrb[0].mxu0 %v456
    %v762 = vpop.f32.mrb[0].mxu0
    %v763 = vadd.f32 0.0, %v762
    %v764 = vpop.f32.mrb[0].mxu0
    %v765 = vpop.f32.mrb[0].mxu0
    %v766 = vadd.f32 0.0, %v765
    %v767 = vpop.f32.mrb[0].mxu0
    %768 = vdwg.mxu0
    %v771 = vunpack.c.l.b16 %v686
    %v772 = vunpack.c.l.b16 %v687
    %v773 = vpack.c.b16 %v772, %v771
    %v776 = vsel %vm257, %v159, 0
    %v779 = vsel %vm257, %v160, 0
    %v782 = vsel %vm257, %v161, 0
    %v785 = vsel %vm257, %v162, 0
    %787 = vmatprep.subr.bf16.mxu0 0
    %788 = vmatpush1.bf16.msra.mxu0 %v773
    %789 = vmatprep.subr.bf16.mxu0 0
    %790 = vmatpush1.bf16.msra.mxu0 0
    %791 = vmatprep.subr.bf16.mxu0 0
    %792 = vmatpush1.bf16.msra.mxu0 0
    %793 = vmatprep.subr.bf16.mxu0 0
    %794 = vmatpush1.bf16.msra.mxu0 0
    %795 = vmatprep.subr.bf16.mxu0 0
    %796 = vmatpush1.bf16.msra.mxu0 0
    %797 = vmatprep.subr.bf16.mxu0 0
    %798 = vmatpush1.bf16.msra.mxu0 0
    %799 = vmatprep.subr.bf16.mxu0 0
    %800 = vmatpush1.bf16.msra.mxu0 0
    %801 = vmatprep.subr.bf16.mxu0 0
    %802 = vmatpush1.bf16.msra.mxu0 0
    %803 = vmatprep.subr.bf16.mxu0 0
    %804 = vmatpush1.bf16.msra.mxu0 0
    %805 = vmatprep.subr.bf16.mxu0 0
    %806 = vmatpush1.bf16.msra.mxu0 0
    %807 = vmatprep.subr.bf16.mxu0 0
    %808 = vmatpush1.bf16.msra.mxu0 0
    %809 = vmatprep.subr.bf16.mxu0 0
    %810 = vmatpush1.bf16.msra.mxu0 0
    %811 = vmatprep.subr.bf16.mxu0 0
    %812 = vmatpush1.bf16.msra.mxu0 0
    %813 = vmatprep.subr.bf16.mxu0 0
    %814 = vmatpush1.bf16.msra.mxu0 0
    %815 = vmatprep.subr.bf16.mxu0 0
    %816 = vmatpush1.bf16.msra.mxu0 0
    %817 = vmatprep.subr.bf16.mxu0 0
    %818 = vmatpush1.bf16.msra.mxu0 0
    %819 = vmatprep.mubr.bf16.mxu0 0
    %820 = vmatmul.mubr.bf16.gmra.mrb[0].mxu0 %v776
    %v821 = vpop.f32.mrb[0].mxu0
    %v822 = vadd.f32 %v739, %v821
    %v823 = vpop.f32.mrb[0].mxu0
    %v824 = vpop.f32.mrb[0].mxu0
    %v825 = vadd.f32 %v742, %v824
    %v826 = vpop.f32.mrb[0].mxu0
    %827 = vmatprep.mubr.bf16.mxu0 0
    %828 = vmatmul.mubr.bf16.gmra.mrb[0].mxu0 %v779
    %v829 = vpop.f32.mrb[0].mxu0
    %v830 = vadd.f32 %v747, %v829
    %v831 = vpop.f32.mrb[0].mxu0
    %v832 = vpop.f32.mrb[0].mxu0
    %v833 = vadd.f32 %v750, %v832
    %v834 = vpop.f32.mrb[0].mxu0
    %835 = vmatprep.mubr.bf16.mxu0 0
    %836 = vmatmul.mubr.bf16.gmra.mrb[0].mxu0 %v782
    %v837 = vpop.f32.mrb[0].mxu0
    %v838 = vadd.f32 %v755, %v837
    %v839 = vpop.f32.mrb[0].mxu0
    %v840 = vpop.f32.mrb[0].mxu0
    %v841 = vadd.f32 %v758, %v840
    %v842 = vpop.f32.mrb[0].mxu0
    %843 = vmatprep.mubr.bf16.mxu0 0
    %844 = vmatmul.mubr.bf16.gmra.mrb[0].mxu0 %v785
    %v845 = vpop.f32.mrb[0].mxu0
    %v846 = vadd.f32 %v763, %v845
    %v847 = vpop.f32.mrb[0].mxu0
    %v848 = vpop.f32.mrb[0].mxu0
    %v849 = vadd.f32 %v766, %v848
    %v850 = vpop.f32.mrb[0].mxu0
    %851 = vdwg.mxu0
    %v852 = vld [vmem:[#allocation10] sm:$0xf]
    %v853 = vld [vmem:[#allocation10 + $0x4] sm:$0xf]
    %v854 = vld [vmem:[#allocation10 + $0x8] sm:$0xf]
    %v855 = vld [vmem:[#allocation10 + $0xc] sm:$0xf]
    %v860 = vunpack.c.l.b16 %v852
    %v861 = vunpack.c.l.b16 %v853
    %v862 = vunpack.c.l.b16 %v854
    %v863 = vunpack.c.l.b16 %v855
    %v864 = vpack.c.b16 %v861, %v860
    %v865 = vpack.c.b16 %v863, %v862
    %v869 = vsel %vm335, %v682, 0
    %v872 = vsel %vm335, %v683, 0
    %v875 = vsel %vm335, %v684, 0
    %v878 = vsel %vm335, %v685, 0
    %880 = vmatprep.subr.bf16.mxu0 0
    %881 = vmatpush1.bf16.msra.mxu0 %v864
    %882 = vmatprep.subr.bf16.mxu0 0
    %883 = vmatpush1.bf16.msra.mxu0 %v865
    %884 = vmatprep.subr.bf16.mxu0 0
    %885 = vmatpush1.bf16.msra.mxu0 0
    %886 = vmatprep.subr.bf16.mxu0 0
    %887 = vmatpush1.bf16.msra.mxu0 0
    %888 = vmatprep.subr.bf16.mxu0 0
    %889 = vmatpush1.bf16.msra.mxu0 0
    %890 = vmatprep.subr.bf16.mxu0 0
    %891 = vmatpush1.bf16.msra.mxu0 0
    %892 = vmatprep.subr.bf16.mxu0 0
    %893 = vmatpush1.bf16.msra.mxu0 0
    %894 = vmatprep.subr.bf16.mxu0 0
    %895 = vmatpush1.bf16.msra.mxu0 0
    %896 = vmatprep.subr.bf16.mxu0 0
    %897 = vmatpush1.bf16.msra.mxu0 0
    %898 = vmatprep.subr.bf16.mxu0 0
    %899 = vmatpush1.bf16.msra.mxu0 0
    %900 = vmatprep.subr.bf16.mxu0 0
    %901 = vmatpush1.bf16.msra.mxu0 0
    %902 = vmatprep.subr.bf16.mxu0 0
    %903 = vmatpush1.bf16.msra.mxu0 0
    %904 = vmatprep.subr.bf16.mxu0 0
    %905 = vmatpush1.bf16.msra.mxu0 0
    %906 = vmatprep.subr.bf16.mxu0 0
    %907 = vmatpush1.bf16.msra.mxu0 0
    %908 = vmatprep.subr.bf16.mxu0 0
    %909 = vmatpush1.bf16.msra.mxu0 0
    %910 = vmatprep.subr.bf16.mxu0 0
    %911 = vmatpush1.bf16.msra.mxu0 0
    %912 = vmatprep.mubr.bf16.mxu0 0
    %913 = vmatmul.mubr.bf16.gmra.mrb[0].mxu0 %v869
    %v914 = vpop.f32.mrb[0].mxu0
    %v915 = vadd.f32 0.0, %v914
    %v916 = vpop.f32.mrb[0].mxu0
    %v917 = vpop.f32.mrb[0].mxu0
    %v918 = vadd.f32 0.0, %v917
    %v919 = vpop.f32.mrb[0].mxu0
    %920 = vmatprep.mubr.bf16.mxu0 0
    %921 = vmatmul.mubr.bf16.gmra.mrb[0].mxu0 %v872
    %v922 = vpop.f32.mrb[0].mxu0
    %v923 = vadd.f32 0.0, %v922
    %v924 = vpop.f32.mrb[0].mxu0
    %v925 = vpop.f32.mrb[0].mxu0
    %v926 = vadd.f32 0.0, %v925
    %v927 = vpop.f32.mrb[0].mxu0
    %928 = vmatprep.mubr.bf16.mxu0 0
    %929 = vmatmul.mubr.bf16.gmra.mrb[0].mxu0 %v875
    %v930 = vpop.f32.mrb[0].mxu0
    %v931 = vadd.f32 0.0, %v930
    %v932 = vpop.f32.mrb[0].mxu0
    %v933 = vpop.f32.mrb[0].mxu0
    %v934 = vadd.f32 0.0, %v933
    %v935 = vpop.f32.mrb[0].mxu0
    %936 = vmatprep.mubr.bf16.mxu0 0
    %937 = vmatmul.mubr.bf16.gmra.mrb[0].mxu0 %v878
    %v938 = vpop.f32.mrb[0].mxu0
    %v939 = vadd.f32 0.0, %v938
    %v940 = vpop.f32.mrb[0].mxu0
    %v941 = vpop.f32.mrb[0].mxu0
    %v942 = vadd.f32 0.0, %v941
    %v943 = vpop.f32.mrb[0].mxu0
    %944 = vdwg.mxu0
    %v945 = vadd.f32 %v822, %v915
    %v946 = vadd.f32 %v825, %v918
    %v947 = vadd.f32 %v830, %v923
    %v948 = vadd.f32 %v833, %v926
    %v949 = vadd.f32 %v838, %v931
    %v950 = vadd.f32 %v841, %v934
    %v951 = vadd.f32 %v846, %v939
    %v952 = vadd.f32 %v849, %v942
    %v953 = vld [vmem:[%s11] sm:$0x1]
    %v955 = vlaneseq
    %v956 = vshrl.u32 %v955, 7
    %v957 = vsub.s32 0, %v956
    %v958 = vrot.slane %v953, %v957
    %v960 = vadd.f32 %v945, %v958
    %v961 = vadd.f32 %v946, %v958
    %v962 = vadd.f32 %v947, %v958
    %v963 = vadd.f32 %v948, %v958
    %v964 = vadd.f32 %v949, %v958
    %v965 = vadd.f32 %v950, %v958
    %v966 = vadd.f32 %v951, %v958
    %v967 = vadd.f32 %v952, %v958
    %968 = vst [vmem:[#allocation11] sm:$0xff] %v960
    %969 = vst [vmem:[#allocation11 + $0x8] sm:$0xff] %v961
    %970 = vst [vmem:[#allocation11 + $0x10] sm:$0xff] %v962
    %971 = vst [vmem:[#allocation11 + $0x18] sm:$0xff] %v963
    %972 = vst [vmem:[#allocation11 + $0x20] sm:$0xff] %v964
    %973 = vst [vmem:[#allocation11 + $0x28] sm:$0xff] %v965
    %974 = vst [vmem:[#allocation11 + $0x30] sm:$0xff] %v966
    %975 = vst [vmem:[#allocation11 + $0x38] sm:$0xff] %v967
    // Predicated region
    $region70: #{tpu_custom_call.1} parent=1 // pred_check
      _
    $region71: #{tpu_custom_call.1} parent=1 // pred_check_branch
      %977 = sbr.rel (0) target = $region73
    $region72: #{tpu_custom_call.1} parent=1 // pred_region
      %s979 = ssub.s32 1024, 1024
      %980 = vsyncadd [#allocation4], %s979
      %s981 = sshll.u32 [#allocation11], 4
      %s982 = int_to_ptr.vmem [resolvable:$true] %s981
      %987 = dma.vmem_to_hbm [thread:$0]  %s982, 1024, %s12, [#allocation4], 128, 128, 8
    $region73: #{tpu_custom_call.1} parent=1 // pred_fallthru
      _
    // Predicated region
    $region74: #{tpu_custom_call.1} parent=1 // pred_check
      _
    $region75: #{tpu_custom_call.1} parent=1 // pred_check_branch
      %989 = sbr.rel (0) target = $region77
    $region76: #{tpu_custom_call.1} parent=1 // pred_region
      %990 = dma.done [#allocation4], 1024
    $region77: #{tpu_custom_call.1} parent=1 // pred_fallthru
      _
    %991 = vsyncpa [#allocation3], 1
    %992 = vsyncpa [#allocation6], 1
    %993 = vsyncpa [#allocation9], 1
    %994 = vsyncpa [#allocation4], 1

</llo_original>
